<compile_context>
chip_gen: v5e
topology: v5e:2x2
jax: 0.10.0
libtpu: 0.0.40
codegen_flags: <defaults>
</compile_context>

<pallas_src>
import numpy as np
import jax
import jax.numpy as jnp
from jax.experimental import pallas as pl
from jax.experimental.pallas import tpu as pltpu

EPS = 1e-6


# ------------------------------ Pallas kernel -------------------------------

def _grid_gen_kernel(cp_t_ref, cp_flat_ref, wxy_ref, bxy_ref, mat_ref, mbt_ref, o_ref):
    # cp_t   : [2, B, F]    control points split into x-plane / y-plane
    # cp_flat: [B, 2F]      row-major flattened control points (fc input)
    # wxy    : [2, 2F, 3]   fc weight columns split into x / y outputs
    # bxy    : [2, 1, 3]    fc bias split the same way
    # mat    : [F, n]       (P_hat @ inv_delta_C)[:, :F]^T   (static)
    # mbt    : [3, n]       (P_hat @ inv_delta_C)[:, F:]^T   (static)
    # o      : [2, B, n]    x-plane / y-plane of batch_P_prime (lane-dense last dim)
    cp_flat = cp_flat_ref[...]
    mat = mat_ref[...]
    mbt = mbt_ref[...]
    for c in range(2):  # static 2-way unroll: x plane, then y plane
        ex_c = (
            jnp.dot(cp_flat, wxy_ref[c], preferred_element_type=jnp.float32)
            + bxy_ref[c]
        )                                                            # [B, 3]
        o_ref[c] = (
            jnp.dot(cp_t_ref[c], mat, preferred_element_type=jnp.float32)
            + jnp.dot(ex_c, mbt, preferred_element_type=jnp.float32)
        )                                                            # [B, n]


# ------------------------- host-side (static) builders ----------------------

def build_C_np(Fn):
    half = Fn // 2
    x = np.linspace(-1.0, 1.0, half, dtype=np.float64)
    top = np.stack([x, -np.ones(half, np.float64)], axis=1)
    bot = np.stack([x, np.ones(half, np.float64)], axis=1)
    return np.concatenate([top, bot], axis=0)                        # [F, 2]


def build_P_np(I_r_height, I_r_width):
    gx = (np.arange(-I_r_width, I_r_width, 2, dtype=np.float64) + 1.0) / float(I_r_width)
    gy = (np.arange(-I_r_height, I_r_height, 2, dtype=np.float64) + 1.0) / float(I_r_height)
    P = np.stack(np.meshgrid(gx, gy, indexing="ij"), axis=2)         # [W, H, 2]
    P = np.transpose(P, (1, 0, 2))                                   # [H, W, 2]
    return P.reshape(-1, 2)                                          # [H*W, 2]


def build_inv_delta_C_np(C, Fn):
    # TODO(synk): torch.inverse has no Pallas equivalent; it is input-independent so it
    # is computed host-side in float64 (same as the torch module's float64 build).
    hat_C = np.zeros((Fn, Fn), dtype=np.float64)
    for i in range(Fn):
        for j in range(i, Fn):
            if i == j:
                hat_C[i, j] = 1.0
            else:
                r = np.linalg.norm(C[i] - C[j])
                hat_C[i, j] = r
                hat_C[j, i] = r
    hat_C = (hat_C ** 2) * np.log(hat_C)
    delta_C = np.concatenate(
        [
            np.concatenate([np.ones((Fn, 1)), C, hat_C], axis=1),
            np.concatenate([np.zeros((2, 3)), C.T], axis=1),
            np.concatenate([np.zeros((1, 3)), np.ones((1, Fn))], axis=1),
        ],
        axis=0,
    )
    return np.linalg.inv(delta_C)                                    # [F+3, F+3]


def build_P_hat_np(C, P):
    # float64 RBF build, identical formula to torch's build_P_hat_paddle.
    n = P.shape[0]
    dx = P[:, 0:1] - C[:, 0][None, :]
    dy = P[:, 1:2] - C[:, 1][None, :]
    r2 = dx * dx + dy * dy
    r = np.sqrt(r2)
    rbf = r2 * np.log(r + EPS)
    return np.concatenate([np.ones((n, 1), np.float64), P, rbf], axis=1)   # [n, F+3]


# --------------------------------- wrapper -----------------------------------

def grid_generator(batch_C_prime, I_r_size, fc_w, fc_b, num_fiducial):
    """batch_C_prime: [B, F, 2] f32; I_r_size: (H, W); fc_w: [2F, 6]; fc_b: [1, 6]."""
    Fn = num_fiducial
    B = batch_C_prime.shape[0]
    H, W = I_r_size
    n = H * W

    # ---- static, input-independent precompute (host, float64 -> f32) ----
    C = build_C_np(Fn)
    P = build_P_np(H, W)
    inv_delta_C = build_inv_delta_C_np(C, Fn)                        # [F+3, F+3]
    P_hat = build_P_hat_np(C, P)                                     # [n, F+3]
    M = (P_hat @ inv_delta_C).astype(np.float32)                     # [n, F+3]
    MAt = jnp.asarray(np.ascontiguousarray(M[:, :Fn].T))             # [F, n]
    MBt = jnp.asarray(np.ascontiguousarray(M[:, Fn:].T))             # [3, n]

    # ---- layout plumbing (outside the kernel; pure reshape/transpose) ----
    cp_t = jnp.transpose(batch_C_prime, (2, 0, 1))                   # [2, B, F]
    cp_flat = batch_C_prime.reshape(B, 2 * Fn)                       # [B, 2F]
    wxy = jnp.stack([fc_w[:, 0::2], fc_w[:, 1::2]], axis=0)          # [2, 2F, 3]
    bxy = jnp.stack([fc_b[:, 0::2], fc_b[:, 1::2]], axis=0)          # [2, 1, 3]

    vmem = pl.BlockSpec(memory_space=pltpu.MemorySpace.VMEM)
    out = pl.pallas_call(
        _grid_gen_kernel,
        out_shape=jax.ShapeDtypeStruct((2, B, n), jnp.float32),
        in_specs=[vmem, vmem, vmem, vmem, vmem, vmem],
        out_specs=vmem,
    )(cp_t, cp_flat, wxy, bxy, MAt, MBt)                             # [2, B, n]

    return jnp.transpose(out, (1, 2, 0))                             # [B, n, 2]


# ------------------------------ numpy reference ------------------------------

def reference_np(batch_C_prime, I_r_size, fc_w, fc_b, num_fiducial):
    # Follows the original torch ordering: f64 static build, f32 cast, two-step matmul.
    Fn = num_fiducial
    H, W = I_r_size
    cp = np.asarray(batch_C_prime, np.float32)
    B = cp.shape[0]
    C = build_C_np(Fn)
    P = build_P_np(H, W)
    inv_delta_C = build_inv_delta_C_np(C, Fn).astype(np.float32)
    P_hat = build_P_hat_np(C, P).astype(np.float32)
    ex = (cp.reshape(B, -1) @ np.asarray(fc_w, np.float32)
          + np.asarray(fc_b, np.float32)).reshape(B, 3, 2)
    cwz = np.concatenate([cp, ex], axis=1)                           # [B, F+3, 2]
    T = np.einsum("ij,bjk->bik", inv_delta_C, cwz)
    return np.einsum("nj,bjk->bnk", P_hat, T)                        # [B, n, 2]


# ----------------------------------- main -------------------------------------

if __name__ == "__main__":
    B, Fn = 2, 20
    H, W = 16, 16
    in_channels = Fn * 2

    key = jax.random.PRNGKey(0)
    k1, k2, k3 = jax.random.split(key, 3)
    batch_C_prime = jax.random.uniform(k1, (B, Fn, 2), jnp.float32, -1.0, 1.0)

    # Deterministic nn.Linear(in_channels, 6) init (kaiming-uniform-like bounds).
    # fc_w is stored pre-transposed ([in, out]) so the forward is x @ fc_w + fc_b.
    bound = 1.0 / np.sqrt(in_channels)
    fc_w = jax.random.uniform(k2, (in_channels, 6), jnp.float32, -bound, bound)
    fc_b = jax.random.uniform(k3, (1, 6), jnp.float32, -bound, bound)

    out = grid_generator(batch_C_prime, (H, W), fc_w, fc_b, Fn)
    out = jax.block_until_ready(out)

    ref = reference_np(np.asarray(batch_C_prime), (H, W),
                       np.asarray(fc_w), np.asarray(fc_b), Fn)
    assert out.shape == (B, H * W, 2), out.shape
    np.testing.assert_allclose(np.asarray(out), ref, rtol=2e-3, atol=2e-3)
    print("KERNEL_OK")
</pallas_src>

<mosaic_0001>
module attributes {stable_mosaic.version = 11 : i64} {
  func.func @_grid_gen_kernel(%arg0: memref<2x2x20xf32, #tpu.memory_space<vmem>>, %arg1: memref<2x40xf32, #tpu.memory_space<vmem>>, %arg2: memref<2x40x3xf32, #tpu.memory_space<vmem>>, %arg3: memref<2x1x3xf32, #tpu.memory_space<vmem>>, %arg4: memref<20x256xf32, #tpu.memory_space<vmem>>, %arg5: memref<3x256xf32, #tpu.memory_space<vmem>>, %arg6: memref<2x2x256xf32, #tpu.memory_space<vmem>>) attributes {dimension_semantics = [], scalar_prefetch = 0 : i64, scratch_operands = 0 : i64, tpu.core_type = #tpu.core_type<tc>} {
    %c0 = arith.constant 0 : index
    %c0_0 = arith.constant 0 : index
    %0 = vector.load %arg1[%c0, %c0_0] : memref<2x40xf32, #tpu.memory_space<vmem>>, vector<2x40xf32>
    %c0_1 = arith.constant 0 : index
    %c0_2 = arith.constant 0 : index
    %1 = vector.load %arg4[%c0_1, %c0_2] : memref<20x256xf32, #tpu.memory_space<vmem>>, vector<20x256xf32>
    %c0_3 = arith.constant 0 : index
    %c0_4 = arith.constant 0 : index
    %2 = vector.load %arg5[%c0_3, %c0_4] : memref<3x256xf32, #tpu.memory_space<vmem>>, vector<3x256xf32>
    %c0_5 = arith.constant 0 : index
    %c0_6 = arith.constant 0 : index
    %c0_7 = arith.constant 0 : index
    %3 = vector.load %arg2[%c0_5, %c0_6, %c0_7] : memref<2x40x3xf32, #tpu.memory_space<vmem>>, vector<1x40x3xf32>
    %4 = vector.shape_cast %3 : vector<1x40x3xf32> to vector<40x3xf32>
    %cst = arith.constant dense<0.000000e+00> : vector<2x3xf32>
    %5 = tpu.matmul %0, %4, %cst {dimension_numbers = #tpu.dot_dimension_numbers<[1], [0], [0], [1], [0, 0, 1, 1], [], []>} : vector<2x40xf32>, vector<40x3xf32>, vector<2x3xf32> -> vector<2x3xf32>
    %c0_8 = arith.constant 0 : index
    %c0_9 = arith.constant 0 : index
    %c0_10 = arith.constant 0 : index
    %6 = vector.load %arg3[%c0_8, %c0_9, %c0_10] : memref<2x1x3xf32, #tpu.memory_space<vmem>>, vector<1x1x3xf32>
    %7 = vector.shape_cast %6 : vector<1x1x3xf32> to vector<1x3xf32>
    %8 = vector.broadcast %7 : vector<1x3xf32> to vector<2x3xf32>
    %9 = arith.addf %5, %8 : vector<2x3xf32>
    %c0_11 = arith.constant 0 : index
    %c0_12 = arith.constant 0 : index
    %c0_13 = arith.constant 0 : index
    %10 = vector.load %arg0[%c0_11, %c0_12, %c0_13] : memref<2x2x20xf32, #tpu.memory_space<vmem>>, vector<1x2x20xf32>
    %11 = vector.shape_cast %10 : vector<1x2x20xf32> to vector<2x20xf32>
    %cst_14 = arith.constant dense<0.000000e+00> : vector<2x256xf32>
    %12 = tpu.matmul %11, %1, %cst_14 {dimension_numbers = #tpu.dot_dimension_numbers<[1], [0], [0], [1], [0, 0, 1, 1], [], []>} : vector<2x20xf32>, vector<20x256xf32>, vector<2x256xf32> -> vector<2x256xf32>
    %cst_15 = arith.constant dense<0.000000e+00> : vector<2x256xf32>
    %13 = tpu.matmul %9, %2, %cst_15 {dimension_numbers = #tpu.dot_dimension_numbers<[1], [0], [0], [1], [0, 0, 1, 1], [], []>} : vector<2x3xf32>, vector<3x256xf32>, vector<2x256xf32> -> vector<2x256xf32>
    %14 = arith.addf %12, %13 : vector<2x256xf32>
    %c0_16 = arith.constant 0 : index
    %c0_17 = arith.constant 0 : index
    %c0_18 = arith.constant 0 : index
    %15 = vector.load %arg6[%c0_16, %c0_17, %c0_18] : memref<2x2x256xf32, #tpu.memory_space<vmem>>, vector<1x2x256xf32>
    %16 = vector.shape_cast %15 : vector<1x2x256xf32> to vector<2x256xf32>
    %17 = vector.shape_cast %14 : vector<2x256xf32> to vector<1x2x256xf32>
    tpu.vector_store %arg6[%c0_16, %c0_17, %c0_18], %17 {strides = array<i32>} : memref<2x2x256xf32, #tpu.memory_space<vmem>>, vector<1x2x256xf32>,
    %c1 = arith.constant 1 : index
    %c0_19 = arith.constant 0 : index
    %c0_20 = arith.constant 0 : index
    %18 = vector.load %arg2[%c1, %c0_19, %c0_20] : memref<2x40x3xf32, #tpu.memory_space<vmem>>, vector<1x40x3xf32>
    %19 = vector.shape_cast %18 : vector<1x40x3xf32> to vector<40x3xf32>
    %cst_21 = arith.constant dense<0.000000e+00> : vector<2x3xf32>
    %20 = tpu.matmul %0, %19, %cst_21 {dimension_numbers = #tpu.dot_dimension_numbers<[1], [0], [0], [1], [0, 0, 1, 1], [], []>} : vector<2x40xf32>, vector<40x3xf32>, vector<2x3xf32> -> vector<2x3xf32>
    %c1_22 = arith.constant 1 : index
    %c0_23 = arith.constant 0 : index
    %c0_24 = arith.constant 0 : index
    %21 = vector.load %arg3[%c1_22, %c0_23, %c0_24] : memref<2x1x3xf32, #tpu.memory_space<vmem>>, vector<1x1x3xf32>
    %22 = vector.shape_cast %21 : vector<1x1x3xf32> to vector<1x3xf32>
    %23 = vector.broadcast %22 : vector<1x3xf32> to vector<2x3xf32>
    %24 = arith.addf %20, %23 : vector<2x3xf32>
    %c1_25 = arith.constant 1 : index
    %c0_26 = arith.constant 0 : index
    %c0_27 = arith.constant 0 : index
    %25 = vector.load %arg0[%c1_25, %c0_26, %c0_27] : memref<2x2x20xf32, #tpu.memory_space<vmem>>, vector<1x2x20xf32>
    %26 = vector.shape_cast %25 : vector<1x2x20xf32> to vector<2x20xf32>
    %cst_28 = arith.constant dense<0.000000e+00> : vector<2x256xf32>
    %27 = tpu.matmul %26, %1, %cst_28 {dimension_numbers = #tpu.dot_dimension_numbers<[1], [0], [0], [1], [0, 0, 1, 1], [], []>} : vector<2x20xf32>, vector<20x256xf32>, vector<2x256xf32> -> vector<2x256xf32>
    %cst_29 = arith.constant dense<0.000000e+00> : vector<2x256xf32>
    %28 = tpu.matmul %24, %2, %cst_29 {dimension_numbers = #tpu.dot_dimension_numbers<[1], [0], [0], [1], [0, 0, 1, 1], [], []>} : vector<2x3xf32>, vector<3x256xf32>, vector<2x256xf32> -> vector<2x256xf32>
    %29 = arith.addf %27, %28 : vector<2x256xf32>
    %c1_30 = arith.constant 1 : index
    %c0_31 = arith.constant 0 : index
    %c0_32 = arith.constant 0 : index
    %30 = vector.load %arg6[%c1_30, %c0_31, %c0_32] : memref<2x2x256xf32, #tpu.memory_space<vmem>>, vector<1x2x256xf32>
    %31 = vector.shape_cast %30 : vector<1x2x256xf32> to vector<2x256xf32>
    %32 = vector.shape_cast %29 : vector<2x256xf32> to vector<1x2x256xf32>
    tpu.vector_store %arg6[%c1_30, %c0_31, %c0_32], %32 {strides = array<i32>} : memref<2x2x256xf32, #tpu.memory_space<vmem>>, vector<1x2x256xf32>,
    return
  }
}

</mosaic_0001>

<llo_original>
// kernel: tpu_custom_call.1
$region0: #{tpu_custom_call.1}
  #allocation0 [shape = 'u32[]', space=smem, size = 0x4, offset = 0x4, fixed_abs, tag = 'smem constant byte address 0x4 - core index']
  #allocation1 [shape = 'u32[72,128]{1,0:T(1,128)}', space=vmem, size = 0x9000, scoped, tag = 'internal scratch']
  %s0 = inlined_call_operand.vmem [shape: f32[2,2,20], index: 0, kind: input, shape index: {}]
  %s1 = inlined_call_operand.vmem [shape: f32[2,40], index: 1, kind: input, shape index: {}]
  %s2 = inlined_call_operand.vmem [shape: f32[2,40,3], index: 2, kind: input, shape index: {}]
  %s3 = inlined_call_operand.vmem [shape: f32[2,1,3], index: 3, kind: input, shape index: {}]
  %s4 = inlined_call_operand.vmem [shape: f32[20,256], index: 4, kind: input, shape index: {}]
  %s5 = inlined_call_operand.vmem [shape: f32[3,256], index: 5, kind: input, shape index: {}]
  %s6 = inlined_call_operand.hbm [shape: f32[2,2,256], index: 6, kind: output, shape index: {}]
  %s7 = sld [smem:[#allocation0]]
  $region34: #{tpu_custom_call.1} parent=0
    _
  %s9 = ssub.s32 1, %s7
  %s10 = scalar_select 0, %s9, %s7
  $region1: #{tpu_custom_call.1} parent=0
    #allocation2 [shape = 'u8[4096]{0}', space=vmem, size = 0x1000, scoped, tag = 'output window, operand 0, single buffered']
    #allocation3 [shape = 's32[1]{0}', space=sflag, size = 0x4, scoped, tag = 'scoped memory for tpu_custom_call.1']
    %11 = vsyncpa [#allocation3], 0
    // Predicated region
    $region2: #{tpu_custom_call.1} parent=1 // pred_check
      _
    $region3: #{tpu_custom_call.1} parent=1 // pred_check_branch
      %13 = sbr.rel (0) target = $region5
    $region4: #{tpu_custom_call.1} parent=1 // pred_region
      _
    $region5: #{tpu_custom_call.1} parent=1 // pred_fallthru
      _
    // Predicated region
    $region6: #{tpu_custom_call.1} parent=1 // pred_check
      _
    $region7: #{tpu_custom_call.1} parent=1 // pred_check_branch
      %15 = sbr.rel (0) target = $region9
    $region8: #{tpu_custom_call.1} parent=1 // pred_region
      _
    $region9: #{tpu_custom_call.1} parent=1 // pred_fallthru
      _
    // Predicated region
    $region10: #{tpu_custom_call.1} parent=1 // pred_check
      _
    $region11: #{tpu_custom_call.1} parent=1 // pred_check_branch
      %17 = sbr.rel (0) target = $region13
    $region12: #{tpu_custom_call.1} parent=1 // pred_region
      _
    $region13: #{tpu_custom_call.1} parent=1 // pred_fallthru
      _
    // Predicated region
    $region14: #{tpu_custom_call.1} parent=1 // pred_check
      _
    $region15: #{tpu_custom_call.1} parent=1 // pred_check_branch
      %19 = sbr.rel (0) target = $region17
    $region16: #{tpu_custom_call.1} parent=1 // pred_region
      _
    $region17: #{tpu_custom_call.1} parent=1 // pred_fallthru
      _
    // Predicated region
    $region18: #{tpu_custom_call.1} parent=1 // pred_check
      _
    $region19: #{tpu_custom_call.1} parent=1 // pred_check_branch
      %21 = sbr.rel (0) target = $region21
    $region20: #{tpu_custom_call.1} parent=1 // pred_region
      _
    $region21: #{tpu_custom_call.1} parent=1 // pred_fallthru
      _
    // Predicated region
    $region22: #{tpu_custom_call.1} parent=1 // pred_check
      _
    $region23: #{tpu_custom_call.1} parent=1 // pred_check_branch
      %23 = sbr.rel (0) target = $region25
    $region24: #{tpu_custom_call.1} parent=1 // pred_region
      _
    $region25: #{tpu_custom_call.1} parent=1 // pred_fallthru
      _
    %v24 = vld [vmem:[%s1] sm:$0x3]
    %v25 = vld [vmem:[%s4] sm:$0xff]
    %v26 = vld [vmem:[%s4 + $0x8] sm:$0xff]
    %v27 = vld [vmem:[%s4 + $0x10] sm:$0xff]
    %v28 = vld [vmem:[%s4 + $0x18] sm:$0xff]
    %v29 = vld [vmem:[%s4 + $0x20] sm:$0xf]
    %v30 = vld [vmem:[%s4 + $0x28] sm:$0xf]
    %v31 = vld [vmem:[%s5] sm:$0x77]
    %v32 = vld [vmem:[%s2] sm:$0xff]
    %v33 = vld [vmem:[%s2 + $0x8] sm:$0xff]
    %v34 = vld [vmem:[%s2 + $0x10] sm:$0xff]
    %v35 = vld [vmem:[%s2 + $0x18] sm:$0xff]
    %v36 = vld [vmem:[%s2 + $0x20] sm:$0xff]
    %v37 = vld [vmem:[%s3] sm:$0x1]
    %v39 = vperm.slane %v37, 0
    %vm41 = vcmask 326656
    %v43 = vsel %vm41, %v24, 0
    %45 = vmatpush.msra.mxu0 0.0
    %46 = vmatpush.msra.mxu0 0.0
    %47 = vmatpush.msra.mxu0 0.0
    %48 = vmatpush.msra.mxu0 0.0
    %49 = vmatpush.msra.mxu0 0.0
    %50 = vmatpush.msra.mxu0 0.0
    %51 = vmatpush.msra.mxu0 0.0
    %52 = vmatpush.msra.mxu0 0.0
    %53 = vmatpush.msra.mxu0 0.0
    %54 = vmatpush.msra.mxu0 0.0
    %55 = vmatpush.msra.mxu0 0.0
    %56 = vmatpush.msra.mxu0 %v36
    %57 = vmatpush.msra.mxu0 %v35
    %58 = vmatpush.msra.mxu0 %v34
    %59 = vmatpush.msra.mxu0 %v33
    %60 = vmatpush.msra.mxu0 %v32
    %61 = vmatmul.f32.gmra.mxu0 %v43
    %v62 = vpop.f32.mrf.mxu0
    %v63 = vadd.f32 %v39, %v62
    %64 = vdwg.mxu0
    %v65 = vld [vmem:[%s0] sm:$0x3]
    %67 = vst [vmem:[#allocation1] ss:$2 sm:$0xff] %v31
    %v68 = vld.sshfl [vmem:[#allocation1] sm:$0xff pattern:$0x75316420]
    %v69 = vld.sshfl [vmem:[#allocation1 + $0x8] sm:$0xff pattern:$0x75316420]
    %vm70 = vcmask 23552
    %v72 = vsel %vm70, %v63, 0
    %vm74 = vcmask 1042432
    %v75 = vsel %vm74, %v68, 0
    %v77 = vsel %vm74, %v69, 0
    %79 = vmatpush.msra.mxu0 0.0
    %80 = vmatpush.msra.mxu0 0.0
    %81 = vmatpush.msra.mxu0 0.0
    %82 = vmatpush.msra.mxu0 0.0
    %83 = vmatpush.msra.mxu0 0.0
    %84 = vmatpush.msra.mxu0 0.0
    %85 = vmatpush.msra.mxu0 0.0
    %86 = vmatpush.msra.mxu0 0.0
    %87 = vmatpush.msra.mxu0 0.0
    %88 = vmatpush.msra.mxu0 0.0
    %89 = vmatpush.msra.mxu0 0.0
    %90 = vmatpush.msra.mxu0 0.0
    %91 = vmatpush.msra.mxu0 0.0
    %92 = vmatpush.msra.mxu0 0.0
    %93 = vmatpush.msra.mxu0 0.0
    %94 = vmatpush.msra.mxu0 %v75
    %95 = vmatmul.f32.gmra.mxu0 %v72
    %v96 = vpop.f32.mrf.mxu0
    %v97 = vadd.f32 0.0, %v96
    %98 = vdwg.mxu0
    %99 = vmatpush.msra.mxu0 0.0
    %100 = vmatpush.msra.mxu0 0.0
    %101 = vmatpush.msra.mxu0 0.0
    %102 = vmatpush.msra.mxu0 0.0
    %103 = vmatpush.msra.mxu0 0.0
    %104 = vmatpush.msra.mxu0 0.0
    %105 = vmatpush.msra.mxu0 0.0
    %106 = vmatpush.msra.mxu0 0.0
    %107 = vmatpush.msra.mxu0 0.0
    %108 = vmatpush.msra.mxu0 0.0
    %109 = vmatpush.msra.mxu0 0.0
    %110 = vmatpush.msra.mxu0 0.0
    %111 = vmatpush.msra.mxu0 0.0
    %112 = vmatpush.msra.mxu0 0.0
    %113 = vmatpush.msra.mxu0 0.0
    %114 = vmatpush.msra.mxu0 %v77
    %115 = vmatmul.f32.gmra.mxu0 %v72
    %v116 = vpop.f32.mrf.mxu0
    %v117 = vadd.f32 0.0, %v116
    %118 = vdwg.mxu0
    %vm119 = vcmask 162816
    %v121 = vsel %vm119, %v65, 0
    %vm123 = vcmask 1043456
    %v125 = vsel %vm123, %v29, 0
    %v128 = vsel %vm123, %v30, 0
    %130 = vmatpush.msra.mxu0 0.0
    %131 = vmatpush.msra.mxu0 0.0
    %132 = vmatpush.msra.mxu0 0.0
    %133 = vmatpush.msra.mxu0 0.0
    %134 = vmatpush.msra.mxu0 0.0
    %135 = vmatpush.msra.mxu0 0.0
    %136 = vmatpush.msra.mxu0 0.0
    %137 = vmatpush.msra.mxu0 0.0
    %138 = vmatpush.msra.mxu0 0.0
    %139 = vmatpush.msra.mxu0 0.0
    %140 = vmatpush.msra.mxu0 0.0
    %141 = vmatpush.msra.mxu0 0.0
    %142 = vmatpush.msra.mxu0 0.0
    %143 = vmatpush.msra.mxu0 %v125
    %144 = vmatpush.msra.mxu0 %v27
    %145 = vmatpush.msra.mxu0 %v25
    %146 = vmatmul.f32.gmra.mxu0 %v121
    %v147 = vpop.f32.mrf.mxu0
    %v148 = vadd.f32 %v97, %v147
    %149 = vdwg.mxu0
    %150 = vmatpush.msra.mxu0 0.0
    %151 = vmatpush.msra.mxu0 0.0
    %152 = vmatpush.msra.mxu0 0.0
    %153 = vmatpush.msra.mxu0 0.0
    %154 = vmatpush.msra.mxu0 0.0
    %155 = vmatpush.msra.mxu0 0.0
    %156 = vmatpush.msra.mxu0 0.0
    %157 = vmatpush.msra.mxu0 0.0
    %158 = vmatpush.msra.mxu0 0.0
    %159 = vmatpush.msra.mxu0 0.0
    %160 = vmatpush.msra.mxu0 0.0
    %161 = vmatpush.msra.mxu0 0.0
    %162 = vmatpush.msra.mxu0 0.0
    %163 = vmatpush.msra.mxu0 %v128
    %164 = vmatpush.msra.mxu0 %v28
    %165 = vmatpush.msra.mxu0 %v26
    %166 = vmatmul.f32.gmra.mxu0 %v121
    %v167 = vpop.f32.mrf.mxu0
    %v168 = vadd.f32 %v117, %v167
    %169 = vdwg.mxu0
    %v172 = vrot.slane %v168, 6
    %vm173 = vcmask 1041408
    %v174 = vsel %vm173, %v148, %v172
    %176 = vst [vmem:[#allocation2] sm:$0xf] %v174
    %s177 = scalar_lea.vmem %s2, 40
    %v178 = vld [vmem:[%s177] sm:$0xff]
    %v179 = vld [vmem:[%s177 + $0x8] sm:$0xff]
    %v180 = vld [vmem:[%s177 + $0x10] sm:$0xff]
    %v181 = vld [vmem:[%s177 + $0x18] sm:$0xff]
    %v182 = vld [vmem:[%s177 + $0x20] sm:$0xff]
    %s183 = scalar_lea.vmem %s3, 1
    %v184 = vld [vmem:[%s183] sm:$0x1]
    %v186 = vperm.slane %v184, 0
    %188 = vmatpush.msra.mxu0 0.0
    %189 = vmatpush.msra.mxu0 0.0
    %190 = vmatpush.msra.mxu0 0.0
    %191 = vmatpush.msra.mxu0 0.0
    %192 = vmatpush.msra.mxu0 0.0
    %193 = vmatpush.msra.mxu0 0.0
    %194 = vmatpush.msra.mxu0 0.0
    %195 = vmatpush.msra.mxu0 0.0
    %196 = vmatpush.msra.mxu0 0.0
    %197 = vmatpush.msra.mxu0 0.0
    %198 = vmatpush.msra.mxu0 0.0
    %199 = vmatpush.msra.mxu0 %v182
    %200 = vmatpush.msra.mxu0 %v181
    %201 = vmatpush.msra.mxu0 %v180
    %202 = vmatpush.msra.mxu0 %v179
    %203 = vmatpush.msra.mxu0 %v178
    %204 = vmatmul.f32.gmra.mxu0 %v43
    %v205 = vpop.f32.mrf.mxu0
    %v206 = vadd.f32 %v186, %v205
    %207 = vdwg.mxu0
    %s208 = scalar_lea.vmem %s0, 2
    %v209 = vld [vmem:[%s208] sm:$0x3]
    %210 = vst [vmem:[#allocation1] ss:$2 sm:$0xff] %v31
    %v211 = vld.sshfl [vmem:[#allocation1] sm:$0xff pattern:$0x75316420]
    %v212 = vld.sshfl [vmem:[#allocation1 + $0x8] sm:$0xff pattern:$0x75316420]
    %v214 = vsel %vm70, %v206, 0
    %v216 = vsel %vm74, %v211, 0
    %v218 = vsel %vm74, %v212, 0
    %220 = vmatpush.msra.mxu0 0.0
    %221 = vmatpush.msra.mxu0 0.0
    %222 = vmatpush.msra.mxu0 0.0
    %223 = vmatpush.msra.mxu0 0.0
    %224 = vmatpush.msra.mxu0 0.0
    %225 = vmatpush.msra.mxu0 0.0
    %226 = vmatpush.msra.mxu0 0.0
    %227 = vmatpush.msra.mxu0 0.0
    %228 = vmatpush.msra.mxu0 0.0
    %229 = vmatpush.msra.mxu0 0.0
    %230 = vmatpush.msra.mxu0 0.0
    %231 = vmatpush.msra.mxu0 0.0
    %232 = vmatpush.msra.mxu0 0.0
    %233 = vmatpush.msra.mxu0 0.0
    %234 = vmatpush.msra.mxu0 0.0
    %235 = vmatpush.msra.mxu0 %v216
    %236 = vmatmul.f32.gmra.mxu0 %v214
    %v237 = vpop.f32.mrf.mxu0
    %v238 = vadd.f32 0.0, %v237
    %239 = vdwg.mxu0
    %240 = vmatpush.msra.mxu0 0.0
    %241 = vmatpush.msra.mxu0 0.0
    %242 = vmatpush.msra.mxu0 0.0
    %243 = vmatpush.msra.mxu0 0.0
    %244 = vmatpush.msra.mxu0 0.0
    %245 = vmatpush.msra.mxu0 0.0
    %246 = vmatpush.msra.mxu0 0.0
    %247 = vmatpush.msra.mxu0 0.0
    %248 = vmatpush.msra.mxu0 0.0
    %249 = vmatpush.msra.mxu0 0.0
    %250 = vmatpush.msra.mxu0 0.0
    %251 = vmatpush.msra.mxu0 0.0
    %252 = vmatpush.msra.mxu0 0.0
    %253 = vmatpush.msra.mxu0 0.0
    %254 = vmatpush.msra.mxu0 0.0
    %255 = vmatpush.msra.mxu0 %v218
    %256 = vmatmul.f32.gmra.mxu0 %v214
    %v257 = vpop.f32.mrf.mxu0
    %v258 = vadd.f32 0.0, %v257
    %259 = vdwg.mxu0
    %v261 = vsel %vm119, %v209, 0
    %263 = vmatpush.msra.mxu0 0.0
    %264 = vmatpush.msra.mxu0 0.0
    %265 = vmatpush.msra.mxu0 0.0
    %266 = vmatpush.msra.mxu0 0.0
    %267 = vmatpush.msra.mxu0 0.0
    %268 = vmatpush.msra.mxu0 0.0
    %269 = vmatpush.msra.mxu0 0.0
    %270 = vmatpush.msra.mxu0 0.0
    %271 = vmatpush.msra.mxu0 0.0
    %272 = vmatpush.msra.mxu0 0.0
    %273 = vmatpush.msra.mxu0 0.0
    %274 = vmatpush.msra.mxu0 0.0
    %275 = vmatpush.msra.mxu0 0.0
    %276 = vmatpush.msra.mxu0 %v125
    %277 = vmatpush.msra.mxu0 %v27
    %278 = vmatpush.msra.mxu0 %v25
    %279 = vmatmul.f32.gmra.mxu0 %v261
    %v280 = vpop.f32.mrf.mxu0
    %v281 = vadd.f32 %v238, %v280
    %282 = vdwg.mxu0
    %283 = vmatpush.msra.mxu0 0.0
    %284 = vmatpush.msra.mxu0 0.0
    %285 = vmatpush.msra.mxu0 0.0
    %286 = vmatpush.msra.mxu0 0.0
    %287 = vmatpush.msra.mxu0 0.0
    %288 = vmatpush.msra.mxu0 0.0
    %289 = vmatpush.msra.mxu0 0.0
    %290 = vmatpush.msra.mxu0 0.0
    %291 = vmatpush.msra.mxu0 0.0
    %292 = vmatpush.msra.mxu0 0.0
    %293 = vmatpush.msra.mxu0 0.0
    %294 = vmatpush.msra.mxu0 0.0
    %295 = vmatpush.msra.mxu0 0.0
    %296 = vmatpush.msra.mxu0 %v128
    %297 = vmatpush.msra.mxu0 %v28
    %298 = vmatpush.msra.mxu0 %v26
    %299 = vmatmul.f32.gmra.mxu0 %v261
    %v300 = vpop.f32.mrf.mxu0
    %v301 = vadd.f32 %v258, %v300
    %302 = vdwg.mxu0
    %v305 = vrot.slane %v301, 6
    %v306 = vsel %vm173, %v281, %v305
    %s308 = scalar_lea.vmem [#allocation2], 4
    %309 = vst [vmem:[%s308] sm:$0xf] %v306
    // Predicated region
    $region26: #{tpu_custom_call.1} parent=1 // pred_check
      _
    $region27: #{tpu_custom_call.1} parent=1 // pred_check_branch
      %311 = sbr.rel (0) target = $region29
    $region28: #{tpu_custom_call.1} parent=1 // pred_region
      %313 = vsyncadd [#allocation3], 0
      %s314 = sshll.u32 [#allocation2], 4
      %s315 = int_to_ptr.vmem [resolvable:$true] %s314
      %s316 = sshll.u32 %s6, 4
      %s317 = int_to_ptr.hbm [resolvable:$true] %s316
      %322 = dma.vmem_to_hbm [thread:$0]  %s315, 128, %s317, [#allocation3], 64, 64, 4
    $region29: #{tpu_custom_call.1} parent=1 // pred_fallthru
      _
    // Predicated region
    $region30: #{tpu_custom_call.1} parent=1 // pred_check
      _
    $region31: #{tpu_custom_call.1} parent=1 // pred_check_branch
      %324 = sbr.rel (0) target = $region33
    $region32: #{tpu_custom_call.1} parent=1 // pred_region
      %326 = dma.done [#allocation3], 128
    $region33: #{tpu_custom_call.1} parent=1 // pred_fallthru
      _
    %327 = vsyncpa [#allocation3], 1

</llo_original>
